<compile_context>
chip_gen: v7x
topology: tpu7x:2x2x1
jax: 0.10.0
libtpu: 0.0.40
codegen_flags: <defaults>
</compile_context>

<pallas_src>
import functools

import jax
import jax.numpy as jnp
from jax import lax
from jax.experimental import pallas as pl
from jax.experimental.pallas import tpu as pltpu


def _codebook_emb_kernel(idx_ref, packed_ref, cb_ref, o_ref, *,
                         block_b, num_field, hidden, batch):
    # idx_ref    : (B*F,) int32 in SMEM (scalar prefetch)
    # packed_ref : (NumFeat, 2*H) VMEM-resident; [:, :H] = weight, [:, H:] = mask (0/1)
    # cb_ref     : (NumField, H) codebook, VMEM-resident
    # o_ref      : (block_b, NumField * H) lane-dense output tile
    i = pl.program_id(0)
    base = i * block_b * num_field

    if batch % block_b == 0:
        rows = block_b                                    # static trip count
    else:
        rows = jnp.minimum(block_b, batch - i * block_b)  # tail-tile guard

    def row_body(r, carry):
        flat0 = base + r * num_field
        parts = []
        for f in range(num_field):            # static unroll (num_field is small)
            tok = idx_ref[flat0 + f]          # scalar row index from SMEM
            g = packed_ref[pl.ds(tok, 1), :]  # (1, 2H) single gathered row
            w1 = g[:, :hidden]                # (1, H) weight half (static lane slice)
            mk = g[:, hidden:]                # (1, H) mask half   (static lane slice)
            cb = cb_ref[f:f + 1, :]           # (1, H) codebook row (static field)
            # (1 - mk) * w1 + mk * cb  ==  w1 + mk * (cb - w1)
            parts.append(w1 + mk * (cb - w1))
        row = parts[0] if num_field == 1 else jnp.concatenate(parts, axis=1)
        o_ref[pl.ds(r, 1), :] = row.astype(o_ref.dtype)   # (1, F*H) lane-dense store
        return carry

    lax.fori_loop(0, rows, row_body, 0)


def codebook_emb_forward(x, weight, codebook_mask, codebook=None, *, block_b=None):
    """x: (B, F) int32, weight/codebook_mask: (NumFeat, H), codebook: (F, H) or None.

    Returns (B, F, H) = (~codebook_mask[x]) * weight[x] + codebook_mask[x] * codebook.
    """
    B, F = x.shape
    NF, H = weight.shape
    dtype = weight.dtype

    mask_f = codebook_mask.astype(dtype)                  # 0.0 / 1.0, same math as torch
    if codebook is None:
        codebook = jnp.zeros((F, H), dtype=dtype)         # (~mask) * w1 path
    codebook = codebook.astype(dtype)

    # Pack weight | mask side by side: one dynamic gather per token in-kernel.
    packed = jnp.concatenate([weight, mask_f], axis=1)    # (NF, 2H)

    flat_idx = x.reshape(-1).astype(jnp.int32)            # (B*F,) 1-D SMEM footprint

    # Tile ~512 gathered rows per grid step; keep the block sublane-legal.
    if block_b is None:
        block_b = max(1, 512 // max(F, 1))
    block_b = min(block_b, B)
    if block_b < B:
        block_b = max(8, (block_b // 8) * 8)
        block_b = min(block_b, B)
    grid = pl.cdiv(B, block_b)

    # VMEM budget: resident tables (x2 for pipeline buffers) + output tile (x2).
    itemsize = jnp.dtype(dtype).itemsize
    resident = 2 * (NF * 2 * H + F * H) * itemsize
    out_buf = 2 * block_b * F * H * itemsize
    vmem_needed = resident + out_buf
    if vmem_needed > 48 * 1024 * 1024:
        # TODO(synk): large-table variant: keep the packed table in HBM (pl.ANY)
        # and gather rows with overlapped pltpu.make_async_copy DMAs.
        raise ValueError("embedding table too large for the VMEM-resident path")
    compiler_kwargs = {"dimension_semantics": ("parallel",)}
    if vmem_needed > 12 * 1024 * 1024:
        compiler_kwargs["vmem_limit_bytes"] = int(min(60 * 1024 * 1024,
                                                      2 * vmem_needed))

    kernel = functools.partial(
        _codebook_emb_kernel,
        block_b=block_b, num_field=F, hidden=H, batch=B)

    out = pl.pallas_call(
        kernel,
        out_shape=jax.ShapeDtypeStruct((B, F * H), dtype),
        grid_spec=pltpu.PrefetchScalarGridSpec(
            num_scalar_prefetch=1,
            grid=(grid,),
            in_specs=[
                pl.BlockSpec((NF, 2 * H), lambda i, idx: (0, 0)),  # packed table
                pl.BlockSpec((F, H), lambda i, idx: (0, 0)),       # codebook
            ],
            out_specs=pl.BlockSpec((block_b, F * H), lambda i, idx: (i, 0)),
        ),
        compiler_params=pltpu.CompilerParams(**compiler_kwargs),
    )(flat_idx, packed, codebook)

    return out.reshape(B, F, H)


if __name__ == "__main__":
    # Deterministic synthetic setup (no checkpoint loading).
    key = jax.random.PRNGKey(0)
    k_w, k_cb, k_m, k_x = jax.random.split(key, 4)

    field_dims = (10, 20, 15, 5)          # NumField = 4
    num_feat = sum(field_dims)            # NumFeat = 50
    hidden = 32
    batch = 2
    num_field = len(field_dims)

    weight = jax.random.normal(k_w, (num_feat, hidden), dtype=jnp.float32)
    codebook = jax.random.normal(k_cb, (num_field, hidden), dtype=jnp.float32)
    codebook_mask = jax.random.bernoulli(k_m, 0.3, (num_feat, hidden))
    x = jax.random.randint(k_x, (batch, num_field), 0, num_feat, dtype=jnp.int32)

    emb = codebook_emb_forward(x, weight, codebook_mask, codebook)
    emb = jax.block_until_ready(emb)

    # Pure-JAX reference of CodebookEmb.forward:
    #   (~mask) * w1 + mask * codebook  ==  where(mask, codebook, w1)
    ref = jnp.where(codebook_mask[x], codebook[None, :, :], weight[x])
    assert emb.shape == (batch, num_field, hidden)
    assert jnp.allclose(emb, ref, atol=1e-6), "mismatch vs reference"

    # Also exercise the codebook=None path (emb = (~mask) * w1).
    emb0 = jax.block_until_ready(codebook_emb_forward(x, weight, codebook_mask, None))
    ref0 = jnp.where(codebook_mask[x], jnp.zeros_like(weight[x]), weight[x])
    assert jnp.allclose(emb0, ref0, atol=1e-6), "mismatch vs reference (no codebook)"

    print("KERNEL_OK")
</pallas_src>

<mosaic_0001>
module attributes {stable_mosaic.version = 11 : i64} {
  func.func @_codebook_emb_kernel(%arg0: i32, %arg1: memref<8xi32, #tpu.memory_space<smem>>, %arg2: memref<50x64xf32, #tpu.memory_space<vmem>>, %arg3: memref<4x32xf32, #tpu.memory_space<vmem>>, %arg4: memref<2x128xf32, #tpu.memory_space<vmem>>) attributes {dimension_semantics = [#tpu.dimension_semantics<parallel>], iteration_bounds = array<i64: 1>, scalar_prefetch = 1 : i64, scratch_operands = 0 : i64, tpu.core_type = #tpu.core_type<tc>, window_params = [{pipeline_mode = #tpu.pipeline_mode<synchronous>, transform_indices = @transform_0, window_bounds = array<i64: 50, 64>}, {pipeline_mode = #tpu.pipeline_mode<synchronous>, transform_indices = @transform_1, window_bounds = array<i64: 4, 32>}, {transform_indices = @transform_2, window_bounds = array<i64: 2, 128>}]} {
    %c2_i32 = arith.constant 2 : i32
    %0 = arith.muli %arg0, %c2_i32 : i32
    %c4_i32 = arith.constant 4 : i32
    %1 = arith.muli %0, %c4_i32 : i32
    %c0_i32 = arith.constant 0 : i32
    %c2_i32_0 = arith.constant 2 : i32
    %2 = arith.addi %c0_i32, %c2_i32_0 : i32
    %c1_i32 = arith.constant 1 : i32
    scf.for %arg5 = %c0_i32 to %2 step %c1_i32  : i32 {
      %c4_i32_2 = arith.constant 4 : i32
      %3 = arith.muli %arg5, %c4_i32_2 : i32
      %4 = arith.addi %1, %3 : i32
      %c0_i32_3 = arith.constant 0 : i32
      %5 = arith.addi %4, %c0_i32_3 : i32
      %6 = arith.index_cast %5 : i32 to index
      %7 = memref.load %arg1[%6] : memref<8xi32, #tpu.memory_space<smem>>
      %8 = arith.index_cast %7 : i32 to index
      %c0 = arith.constant 0 : index
      %9 = vector.load %arg2[%8, %c0] : memref<50x64xf32, #tpu.memory_space<vmem>>, vector<1x64xf32>
      %10 = vector.extract_strided_slice %9 {offsets = [0, 0], sizes = [1, 32], strides = [1, 1]} : vector<1x64xf32> to vector<1x32xf32>
      %11 = vector.extract_strided_slice %9 {offsets = [0, 32], sizes = [1, 32], strides = [1, 1]} : vector<1x64xf32> to vector<1x32xf32>
      %c0_4 = arith.constant 0 : index
      %c0_5 = arith.constant 0 : index
      %12 = vector.load %arg3[%c0_4, %c0_5] : memref<4x32xf32, #tpu.memory_space<vmem>>, vector<1x32xf32>
      %13 = arith.subf %12, %10 : vector<1x32xf32>
      %14 = arith.mulf %11, %13 : vector<1x32xf32>
      %15 = arith.addf %10, %14 : vector<1x32xf32>
      %c1_i32_6 = arith.constant 1 : i32
      %16 = arith.addi %4, %c1_i32_6 : i32
      %17 = arith.index_cast %16 : i32 to index
      %18 = memref.load %arg1[%17] : memref<8xi32, #tpu.memory_space<smem>>
      %19 = arith.index_cast %18 : i32 to index
      %c0_7 = arith.constant 0 : index
      %20 = vector.load %arg2[%19, %c0_7] : memref<50x64xf32, #tpu.memory_space<vmem>>, vector<1x64xf32>
      %21 = vector.extract_strided_slice %20 {offsets = [0, 0], sizes = [1, 32], strides = [1, 1]} : vector<1x64xf32> to vector<1x32xf32>
      %22 = vector.extract_strided_slice %20 {offsets = [0, 32], sizes = [1, 32], strides = [1, 1]} : vector<1x64xf32> to vector<1x32xf32>
      %c1 = arith.constant 1 : index
      %c0_8 = arith.constant 0 : index
      %23 = vector.load %arg3[%c1, %c0_8] : memref<4x32xf32, #tpu.memory_space<vmem>>, vector<1x32xf32>
      %24 = arith.subf %23, %21 : vector<1x32xf32>
      %25 = arith.mulf %22, %24 : vector<1x32xf32>
      %26 = arith.addf %21, %25 : vector<1x32xf32>
      %c2_i32_9 = arith.constant 2 : i32
      %27 = arith.addi %4, %c2_i32_9 : i32
      %28 = arith.index_cast %27 : i32 to index
      %29 = memref.load %arg1[%28] : memref<8xi32, #tpu.memory_space<smem>>
      %30 = arith.index_cast %29 : i32 to index
      %c0_10 = arith.constant 0 : index
      %31 = vector.load %arg2[%30, %c0_10] : memref<50x64xf32, #tpu.memory_space<vmem>>, vector<1x64xf32>
      %32 = vector.extract_strided_slice %31 {offsets = [0, 0], sizes = [1, 32], strides = [1, 1]} : vector<1x64xf32> to vector<1x32xf32>
      %33 = vector.extract_strided_slice %31 {offsets = [0, 32], sizes = [1, 32], strides = [1, 1]} : vector<1x64xf32> to vector<1x32xf32>
      %c2 = arith.constant 2 : index
      %c0_11 = arith.constant 0 : index
      %34 = vector.load %arg3[%c2, %c0_11] : memref<4x32xf32, #tpu.memory_space<vmem>>, vector<1x32xf32>
      %35 = arith.subf %34, %32 : vector<1x32xf32>
      %36 = arith.mulf %33, %35 : vector<1x32xf32>
      %37 = arith.addf %32, %36 : vector<1x32xf32>
      %c3_i32 = arith.constant 3 : i32
      %38 = arith.addi %4, %c3_i32 : i32
      %39 = arith.index_cast %38 : i32 to index
      %40 = memref.load %arg1[%39] : memref<8xi32, #tpu.memory_space<smem>>
      %41 = arith.index_cast %40 : i32 to index
      %c0_12 = arith.constant 0 : index
      %42 = vector.load %arg2[%41, %c0_12] : memref<50x64xf32, #tpu.memory_space<vmem>>, vector<1x64xf32>
      %43 = vector.extract_strided_slice %42 {offsets = [0, 0], sizes = [1, 32], strides = [1, 1]} : vector<1x64xf32> to vector<1x32xf32>
      %44 = vector.extract_strided_slice %42 {offsets = [0, 32], sizes = [1, 32], strides = [1, 1]} : vector<1x64xf32> to vector<1x32xf32>
      %c3 = arith.constant 3 : index
      %c0_13 = arith.constant 0 : index
      %45 = vector.load %arg3[%c3, %c0_13] : memref<4x32xf32, #tpu.memory_space<vmem>>, vector<1x32xf32>
      %46 = arith.subf %45, %43 : vector<1x32xf32>
      %47 = arith.mulf %44, %46 : vector<1x32xf32>
      %48 = arith.addf %43, %47 : vector<1x32xf32>
      %49 = tpu.concatenate %15, %26, %37, %48 in 1 : vector<1x32xf32>, vector<1x32xf32>, vector<1x32xf32>, vector<1x32xf32> -> vector<1x128xf32>
      %50 = arith.index_cast %arg5 : i32 to index
      %c0_14 = arith.constant 0 : index
      %51 = vector.load %arg4[%50, %c0_14] : memref<2x128xf32, #tpu.memory_space<vmem>>, vector<1x128xf32>
      tpu.vector_store %arg4[%50, %c0_14], %49 {strides = array<i32>} : memref<2x128xf32, #tpu.memory_space<vmem>>, vector<1x128xf32>,
    }
    %c2_i32_1 = arith.constant 2 : i32
    return
  }
  func.func @transform_0(%arg0: i32, %arg1: memref<8xi32, #tpu.memory_space<smem>>) -> (i32, i32) {
    %c0_i32 = arith.constant 0 : i32
    %c0_i32_0 = arith.constant 0 : i32
    %c0_i32_1 = arith.constant 0 : i32
    return %c0_i32, %c0_i32_0 : i32, i32
  }
  func.func @transform_1(%arg0: i32, %arg1: memref<8xi32, #tpu.memory_space<smem>>) -> (i32, i32) {
    %c0_i32 = arith.constant 0 : i32
    %c0_i32_0 = arith.constant 0 : i32
    %c0_i32_1 = arith.constant 0 : i32
    return %c0_i32, %c0_i32_0 : i32, i32
  }
  func.func @transform_2(%arg0: i32, %arg1: memref<8xi32, #tpu.memory_space<smem>>) -> (i32, i32) {
    %c0_i32 = arith.constant 0 : i32
    %c0_i32_0 = arith.constant 0 : i32
    return %arg0, %c0_i32 : i32, i32
  }
}

</mosaic_0001>

<llo_original>
// kernel: tpu_custom_call.1
$region0: #{tpu_custom_call.1}
  #allocation0 [shape = 'u32[]', space=smem, size = 0x4, offset = 0x4, fixed_abs, tag = 'smem constant byte address 0x4 - core index']
  #allocation1 [shape = 'u32[144,128]{1,0:T(1,128)}', space=vmem, size = 0x12000, scoped, tag = 'internal scratch']
  #allocation2 [shape = 's32[1]{0}', space=sflag, size = 0x4, scoped, tag = 'scoped memory for tpu_custom_call.1']
  #allocation3 [shape = 'u8[512]{0}', space=smem, size = 0x200, scoped, tag = 'prefetched SMEM operand 0']
  %s0 = inlined_call_operand.hbm [shape: s32[8], index: 0, kind: input, shape index: {}]
  %s1 = inlined_call_operand.hbm [shape: f32[50,64], index: 1, kind: input, shape index: {}]
  %s2 = inlined_call_operand.vmem [shape: f32[4,32], index: 2, kind: input, shape index: {}]
  %s3 = inlined_call_operand.hbm [shape: f32[2,128], index: 3, kind: output, shape index: {}]
  %s4 = sld [smem:[#allocation0]]
  $region29: #{tpu_custom_call.1} parent=0
    _
  %s6 = ssub.s32 1, %s4
  %s7 = scalar_select 0, %s6, %s4
  %9 = dma.hbm_to_smem %s0, 16, [#allocation3], [#allocation2]
  %10 = dma.done [#allocation2], 16
  %11 = sfence
  $region1: #{tpu_custom_call.1} parent=0
    #allocation4 [shape = 'u8[28672]{0}', space=vmem, size = 0x7000, scoped, tag = 'input window, operand 1, single buffered']
    #allocation5 [shape = 's32[1]{0}', space=sflag, size = 0x4, scoped, tag = 'scoped memory for tpu_custom_call.1']
    #allocation6 [shape = 's32[1]{0}', space=sflag, size = 0x4, scoped, tag = 'scoped memory for tpu_custom_call.1']
    #allocation7 [shape = 'u8[1024]{0}', space=vmem, size = 0x400, scoped, tag = 'output window, operand 0, single buffered']
    %12 = vsyncpa [#allocation5], 0
    %13 = vsyncpa [#allocation6], 0
    // Predicated region
    $region2: #{tpu_custom_call.1} parent=1 // pred_check
      _
    $region3: #{tpu_custom_call.1} parent=1 // pred_check_branch
      %15 = sbr.rel (0) target = $region5
    $region4: #{tpu_custom_call.1} parent=1 // pred_region
      %s17 = ssub.s32 896, 896
      %18 = vsyncadd [#allocation5], %s17
      %s19 = sshll.u32 [#allocation4], 4
      %s20 = int_to_ptr.vmem [resolvable:$true] %s19
      %25 = dma.hbm_to_vmem [thread:$0]  %s1, 896, %s20, [#allocation5], 128, 128, 8
    $region5: #{tpu_custom_call.1} parent=1 // pred_fallthru
      _
    // Predicated region
    $region6: #{tpu_custom_call.1} parent=1 // pred_check
      _
    $region7: #{tpu_custom_call.1} parent=1 // pred_check_branch
      %27 = sbr.rel (0) target = $region9
    $region8: #{tpu_custom_call.1} parent=1 // pred_region
      _
    $region9: #{tpu_custom_call.1} parent=1 // pred_fallthru
      _
    // Predicated region
    $region10: #{tpu_custom_call.1} parent=1 // pred_check
      _
    $region11: #{tpu_custom_call.1} parent=1 // pred_check_branch
      %29 = sbr.rel (0) target = $region13
    $region12: #{tpu_custom_call.1} parent=1 // pred_region
      %30 = dma.done [#allocation5], 896
    $region13: #{tpu_custom_call.1} parent=1 // pred_fallthru
      _
    %s31 = smul.u32 0, 8
    loop: start=0, step=1, limit=2
    $region14: #{tpu_custom_call.1} parent=1 // loop_pre_header
      _
    $region15: #{tpu_custom_call.1} parent=1 // loop_header
      %s33 = sphi 0, %s37
      %p34 = scmp.ge.s32.totalorder %s33, 2
    $region16: #{tpu_custom_call.1} parent=1 // loop_header_branch
      %36 = sbr.rel (%p34) target = $region20
    $region17: #{tpu_custom_call.1} parent=1 // loop_body
      %s38 = smul.u32 %s33, 4
      %s39 = sadd.s32 %s31, %s38
      %s40 = sld [smem:[#allocation3 + %s39]]
      %s41 = scalar_lea.vmem [#allocation4], %s40
      %v42 = vld [vmem:[%s41] sm:$0x1]
      %v43 = vld [vmem:[%s2] sm:$0x1]
      %v44 = vsub.f32 %v43, %v42
      %46 = vrot.lane.b32.xlu0 %v44, 32
      %v47 = vpop.permute.xlu0 %46
      %v49 = vmul.f32 %v42, %v47
      %51 = vrot.lane.b32.xlu0 %v49, 96
      %v52 = vpop.permute.xlu0 %51
      %v54 = vadd.f32 %v42, %v52
      %s55 = sadd.s32 %s39, 1
      %s56 = sld [smem:[#allocation3 + %s55]]
      %s57 = scalar_lea.vmem [#allocation4], %s56
      %v58 = vld [vmem:[%s57] sm:$0x1]
      %v59 = vld [vmem:[%s2 + $0x1] sm:$0x1]
      %v60 = vsub.f32 %v59, %v58
      %62 = vrot.lane.b32.xlu0 %v60, 32
      %v63 = vpop.permute.xlu0 %62
      %v65 = vmul.f32 %v58, %v63
      %67 = vrot.lane.b32.xlu0 %v65, 96
      %v68 = vpop.permute.xlu0 %67
      %v70 = vadd.f32 %v58, %v68
      %s71 = sadd.s32 %s39, 2
      %s72 = sld [smem:[#allocation3 + %s71]]
      %s73 = scalar_lea.vmem [#allocation4], %s72
      %v74 = vld [vmem:[%s73] sm:$0x1]
      %v75 = vld [vmem:[%s2 + $0x2] sm:$0x1]
      %v76 = vsub.f32 %v75, %v74
      %78 = vrot.lane.b32.xlu0 %v76, 32
      %v79 = vpop.permute.xlu0 %78
      %v81 = vmul.f32 %v74, %v79
      %83 = vrot.lane.b32.xlu0 %v81, 96
      %v84 = vpop.permute.xlu0 %83
      %v86 = vadd.f32 %v74, %v84
      %s87 = sadd.s32 %s39, 3
      %s88 = sld [smem:[#allocation3 + %s87]]
      %s89 = scalar_lea.vmem [#allocation4], %s88
      %v90 = vld [vmem:[%s89] sm:$0x1]
      %v91 = vld [vmem:[%s2 + $0x3] sm:$0x1]
      %v92 = vsub.f32 %v91, %v90
      %94 = vrot.lane.b32.xlu0 %v92, 32
      %v95 = vpop.permute.xlu0 %94
      %v97 = vmul.f32 %v90, %v95
      %99 = vrot.lane.b32.xlu0 %v97, 96
      %v100 = vpop.permute.xlu0 %99
      %v102 = vadd.f32 %v90, %v100
      %104 = vrot.lane.b32.xlu0 %v70, 32
      %v105 = vpop.permute.xlu0 %104
      %108 = vrot.lane.b32.xlu0 %v86, 64
      %v109 = vpop.permute.xlu0 %108
      %112 = vrot.lane.b32.xlu0 %v102, 96
      %v113 = vpop.permute.xlu0 %112
      %vm115 = vcmask 261120
      %v116 = vsel %vm115, %v54, %v105
      %vm117 = vcmask 523264
      %v118 = vsel %vm117, %v116, %v109
      %vm119 = vcmask 785408
      %v120 = vsel %vm119, %v118, %v113
      %s121 = scalar_lea.vmem [#allocation7], %s33
      %122 = vst [vmem:[%s121] sm:$0x1] %v120
    $region18: #{tpu_custom_call.1} parent=1 // loop_footer
      %s37 = sadd.s32 1, %s33
    $region19: #{tpu_custom_call.1} parent=1 // loop_footer_branch
      %32 = sbr.rel target = $region15
    $region20: #{tpu_custom_call.1} parent=1 // loop_exit
      _
    // Predicated region
    $region21: #{tpu_custom_call.1} parent=1 // pred_check
      _
    $region22: #{tpu_custom_call.1} parent=1 // pred_check_branch
      %124 = sbr.rel (0) target = $region24
    $region23: #{tpu_custom_call.1} parent=1 // pred_region
      %s126 = ssub.s32 32, 32
      %127 = vsyncadd [#allocation6], %s126
      %s129 = sshll.u32 [#allocation7], 4
      %s130 = int_to_ptr.vmem [resolvable:$true] %s129
      %132 = dma.vmem_to_hbm [thread:$0]  %s130, 32, %s3, [#allocation6]
    $region24: #{tpu_custom_call.1} parent=1 // pred_fallthru
      _
    // Predicated region
    $region25: #{tpu_custom_call.1} parent=1 // pred_check
      _
    $region26: #{tpu_custom_call.1} parent=1 // pred_check_branch
      %134 = sbr.rel (0) target = $region28
    $region27: #{tpu_custom_call.1} parent=1 // pred_region
      %135 = dma.done [#allocation6], 32
    $region28: #{tpu_custom_call.1} parent=1 // pred_fallthru
      _
    %136 = vsyncpa [#allocation5], 1
    %137 = vsyncpa [#allocation6], 1

</llo_original>
